<compile_context>
chip_gen: v6e
topology: v6e:2x2x1
jax: 0.10.0
libtpu: 0.0.40
codegen_flags: <defaults>
</compile_context>

<pallas_src>
import jax
import jax.numpy as jnp
from jax.experimental import pallas as pl
from jax.experimental.pallas import tpu as pltpu

EPS = 1e-5
NEG_SLOPE = 0.2
LANE = 128        # lane width: feature (last) axes are padded to multiples of this
SUBLANE = 8       # f32 sublane height: batch is padded to a multiple of this
MAX_TILE_M = 256  # batch tile rows for large batches (keeps the 256-wide MXU full)


# ---------------------------------------------------------------------------
# Padding helpers
# ---------------------------------------------------------------------------
def _round_up(n, m):
    return ((n + m - 1) // m) * m


def _pad_last(a, mult, value=0.0):
    pad = (-a.shape[-1]) % mult
    if pad == 0:
        return a
    cfg = [(0, 0)] * (a.ndim - 1) + [(0, pad)]
    return jnp.pad(a, cfg, constant_values=value)


def _pad_first(a, mult):
    pad = (-a.shape[0]) % mult
    if pad == 0:
        return a
    return jnp.pad(a, [(0, pad)] + [(0, 0)] * (a.ndim - 1))


def _pad_rows_to(a, rows):
    pad = rows - a.shape[0]
    return a if pad == 0 else jnp.pad(a, [(0, pad), (0, 0)])


# ---------------------------------------------------------------------------
# Kernels
# ---------------------------------------------------------------------------
def _first_layer_kernel(x_ref, w_ref, z_ref, stats_ref):
    """z = x @ w (bias dropped: cancelled by BN mean); accumulate sum / sum^2."""
    z = jnp.dot(x_ref[...], w_ref[...], preferred_element_type=jnp.float32)

    @pl.when(pl.program_id(0) == 0)
    def _():
        stats_ref[...] = jnp.zeros_like(stats_ref)

    stats_ref[...] += jnp.concatenate(
        [jnp.sum(z, axis=0, keepdims=True),
         jnp.sum(z * z, axis=0, keepdims=True)], axis=0)
    z_ref[...] = z.astype(z_ref.dtype)


def _make_mid_layer_kernel(real_b, tile_m, need_mask):
    """Normalize previous layer + LeakyReLU + matmul + this layer's BN stats."""
    def kernel(z_ref, scale_ref, shift_ref, w_ref, zout_ref, stats_ref):
        i = pl.program_id(0)
        # Fused BN apply (scale/shift already fold gamma & mean) + LeakyReLU(0.2).
        a = z_ref[...].astype(jnp.float32) * scale_ref[...] + shift_ref[...]
        a = jnp.maximum(a, NEG_SLOPE * a)
        if need_mask:
            # Re-zero batch-pad rows so they don't pollute this layer's statistics.
            row = jax.lax.broadcasted_iota(jnp.int32, (tile_m, 1), 0) + i * tile_m
            a = jnp.where(row < real_b, a, 0.0)
        z = jnp.dot(a.astype(w_ref.dtype), w_ref[...],
                    preferred_element_type=jnp.float32)

        @pl.when(i == 0)
        def _():
            stats_ref[...] = jnp.zeros_like(stats_ref)

        stats_ref[...] += jnp.concatenate(
            [jnp.sum(z, axis=0, keepdims=True),
             jnp.sum(z * z, axis=0, keepdims=True)], axis=0)
        zout_ref[...] = z.astype(zout_ref.dtype)
    return kernel


def _last_layer_kernel(z_ref, scale_ref, shift_ref, w_ref, b_ref, o_ref):
    """Normalize previous layer + LeakyReLU + final Linear (+bias) + Tanh."""
    a = z_ref[...].astype(jnp.float32) * scale_ref[...] + shift_ref[...]
    a = jnp.maximum(a, NEG_SLOPE * a)
    z = jnp.dot(a.astype(w_ref.dtype), w_ref[...],
                preferred_element_type=jnp.float32)
    o_ref[...] = jnp.tanh(z + b_ref[...])


# ---------------------------------------------------------------------------
# pallas_call wrappers (one per layer)
# ---------------------------------------------------------------------------
def _call_first(x, w, tile_m, num_tiles):
    b_pad, fin = x.shape
    fout = w.shape[1]
    return pl.pallas_call(
        _first_layer_kernel,
        grid=(num_tiles,),
        in_specs=[pl.BlockSpec((tile_m, fin), lambda i: (i, 0)),
                  pl.BlockSpec((fin, fout), lambda i: (0, 0))],
        out_specs=(pl.BlockSpec((tile_m, fout), lambda i: (i, 0)),
                   pl.BlockSpec((2, fout), lambda i: (0, 0))),
        out_shape=(jax.ShapeDtypeStruct((b_pad, fout), x.dtype),
                   jax.ShapeDtypeStruct((2, fout), jnp.float32)),
        compiler_params=pltpu.CompilerParams(
            dimension_semantics=("arbitrary",)),   # stats accumulator -> sequential
    )(x, w)


def _call_mid(z, scale, shift, w, tile_m, num_tiles, real_b, need_mask):
    b_pad, fin = z.shape
    fout = w.shape[1]
    return pl.pallas_call(
        _make_mid_layer_kernel(real_b, tile_m, need_mask),
        grid=(num_tiles,),
        in_specs=[pl.BlockSpec((tile_m, fin), lambda i: (i, 0)),
                  pl.BlockSpec((1, fin), lambda i: (0, 0)),
                  pl.BlockSpec((1, fin), lambda i: (0, 0)),
                  pl.BlockSpec((fin, fout), lambda i: (0, 0))],
        out_specs=(pl.BlockSpec((tile_m, fout), lambda i: (i, 0)),
                   pl.BlockSpec((2, fout), lambda i: (0, 0))),
        out_shape=(jax.ShapeDtypeStruct((b_pad, fout), z.dtype),
                   jax.ShapeDtypeStruct((2, fout), jnp.float32)),
        compiler_params=pltpu.CompilerParams(
            dimension_semantics=("arbitrary",)),
    )(z, scale, shift, w)


def _call_last(z, scale, shift, w, b, tile_m, num_tiles):
    b_pad, fin = z.shape
    fout = w.shape[1]
    return pl.pallas_call(
        _last_layer_kernel,
        grid=(num_tiles,),
        in_specs=[pl.BlockSpec((tile_m, fin), lambda i: (i, 0)),
                  pl.BlockSpec((1, fin), lambda i: (0, 0)),
                  pl.BlockSpec((1, fin), lambda i: (0, 0)),
                  pl.BlockSpec((fin, fout), lambda i: (0, 0)),
                  pl.BlockSpec((1, fout), lambda i: (0, 0))],
        out_specs=pl.BlockSpec((tile_m, fout), lambda i: (i, 0)),
        out_shape=jax.ShapeDtypeStruct((b_pad, fout), jnp.float32),
        compiler_params=pltpu.CompilerParams(
            dimension_semantics=("parallel",)),    # no cross-tile coupling here
    )(z, scale, shift, w, b)


def _bn_scale_shift(stats, gamma, beta, real_b):
    """Per-feature [1,F] math only: fold gamma and mean into a scale/shift pair."""
    mean = stats[0:1, :] / real_b
    var = jnp.maximum(stats[1:2, :] / real_b - mean * mean, 0.0)
    scale = gamma * jax.lax.rsqrt(var + EPS)
    shift = beta - mean * scale
    return scale, shift


# ---------------------------------------------------------------------------
# Public API
# ---------------------------------------------------------------------------
def prepare_params(params, compute_dtype=jnp.bfloat16):
    """One-time prep (hoisted out of the per-call path): zero-pad feature axes to
    LANE multiples and cast weights to the MXU compute dtype. BN affine params and
    b4 stay f32 (used in f32 per-feature math)."""
    prep = {}
    for i in (1, 2, 3, 4):
        w = _pad_last(_pad_first(params[f"w{i}"], LANE), LANE)
        prep[f"w{i}"] = w.astype(compute_dtype)
    for i in (1, 2, 3):
        prep[f"g{i}"] = _pad_last(params[f"g{i}"], LANE)   # pad gamma with 0 -> padded cols stay 0
        prep[f"be{i}"] = _pad_last(params[f"be{i}"], LANE)
    prep["b4"] = _pad_last(params["b4"], LANE)
    return prep


def generator_forward(x, prep, out_dim):
    """x: [B, input_dim] f32.  prep: output of prepare_params.  out_dim: static int."""
    B = x.shape[0]

    # Batch tiling: pad to a sublane multiple; large batches get 256-row tiles so
    # BlockSpec double-buffering overlaps activation DMA with MXU/VPU work and
    # VMEM stays bounded independent of B (v7x: 64 MiB/TC).
    B8 = _round_up(B, SUBLANE)
    if B8 <= 2 * MAX_TILE_M:
        tile_m, b_pad = B8, B8
    else:
        tile_m = MAX_TILE_M
        b_pad = _round_up(B, tile_m)
    num_tiles = b_pad // tile_m
    need_mask = b_pad != B

    # Pad + cast the streamed input once in the wrapper (halves DMA bytes for bf16).
    xp = _pad_rows_to(_pad_last(x, LANE), b_pad).astype(prep["w1"].dtype)

    z1, s1 = _call_first(xp, prep["w1"], tile_m, num_tiles)
    sc1, sh1 = _bn_scale_shift(s1, prep["g1"], prep["be1"], B)

    z2, s2 = _call_mid(z1, sc1, sh1, prep["w2"], tile_m, num_tiles, B, need_mask)
    sc2, sh2 = _bn_scale_shift(s2, prep["g2"], prep["be2"], B)

    z3, s3 = _call_mid(z2, sc2, sh2, prep["w3"], tile_m, num_tiles, B, need_mask)
    sc3, sh3 = _bn_scale_shift(s3, prep["g3"], prep["be3"], B)

    out = _call_last(z3, sc3, sh3, prep["w4"], prep["b4"], tile_m, num_tiles)
    return out[:B, :out_dim]


# ---------------------------------------------------------------------------
# Synthetic init + pure-JAX reference (matches the PyTorch module, incl. b1..b3)
# ---------------------------------------------------------------------------
def init_params(key, input_dim, hidden_dim, output_dim):
    dims = [input_dim, hidden_dim, hidden_dim * 2, hidden_dim * 4, output_dim]
    params = {}
    keys = jax.random.split(key, 8)
    for i in range(4):
        fan_in, fan_out = dims[i], dims[i + 1]
        bound = 1.0 / jnp.sqrt(fan_in)
        params[f"w{i+1}"] = jax.random.uniform(
            keys[2 * i], (fan_in, fan_out), jnp.float32, -bound, bound)
        params[f"b{i+1}"] = jax.random.uniform(
            keys[2 * i + 1], (1, fan_out), jnp.float32, -bound, bound)
    for i in range(3):  # BatchNorm affine params (PyTorch default: gamma=1, beta=0)
        d = dims[i + 1]
        params[f"g{i+1}"] = jnp.ones((1, d), jnp.float32)
        params[f"be{i+1}"] = jnp.zeros((1, d), jnp.float32)
    return params


def _reference_forward(x, p):
    def bn_lrelu(h, g, be):
        mean = jnp.mean(h, axis=0, keepdims=True)
        var = jnp.mean((h - mean) ** 2, axis=0, keepdims=True)
        hn = (h - mean) / jnp.sqrt(var + EPS) * g + be
        return jnp.where(hn > 0, hn, NEG_SLOPE * hn)
    h = x
    h = bn_lrelu(h @ p["w1"] + p["b1"], p["g1"], p["be1"])
    h = bn_lrelu(h @ p["w2"] + p["b2"], p["g2"], p["be2"])
    h = bn_lrelu(h @ p["w3"] + p["b3"], p["g3"], p["be3"])
    return jnp.tanh(h @ p["w4"] + p["b4"])


if __name__ == "__main__":
    input_dim, hidden_dim, output_dim = 16, 32, 16
    batch = 8

    key = jax.random.PRNGKey(0)
    k_x, k_p = jax.random.split(key)
    x = jax.random.normal(k_x, (batch, input_dim), jnp.float32)
    params = init_params(k_p, input_dim, hidden_dim, output_dim)

    ref = _reference_forward(x, params)

    fwd = jax.jit(generator_forward, static_argnames=("out_dim",))

    # f32 MXU operands: strict check against the PyTorch-equivalent reference.
    prep_f32 = prepare_params(params, compute_dtype=jnp.float32)
    out_f32 = jax.block_until_ready(fwd(x, prep_f32, out_dim=output_dim))
    assert out_f32.shape == (batch, output_dim)
    assert jnp.allclose(out_f32, ref, atol=1e-4, rtol=1e-4)

    # bf16 MXU operands / bf16 inter-layer activations (the realistic fast path):
    # f32 accumulation and f32 BN statistics; loose sanity check vs f32 reference.
    prep_bf16 = prepare_params(params, compute_dtype=jnp.bfloat16)
    out_bf16 = jax.block_until_ready(fwd(x, prep_bf16, out_dim=output_dim))
    assert out_bf16.shape == (batch, output_dim)
    assert jnp.allclose(out_bf16, ref, atol=1e-1, rtol=1e-1)

    print("KERNEL_OK")
</pallas_src>

<mosaic_0001>
module attributes {stable_mosaic.version = 11 : i64} {
  func.func @kernel(%arg0: i32, %arg1: memref<8x128xf32, #tpu.memory_space<vmem>>, %arg2: memref<1x128xf32, #tpu.memory_space<vmem>>, %arg3: memref<1x128xf32, #tpu.memory_space<vmem>>, %arg4: memref<128x128xf32, #tpu.memory_space<vmem>>, %arg5: memref<8x128xf32, #tpu.memory_space<vmem>>, %arg6: memref<2x128xf32, #tpu.memory_space<vmem>>) attributes {dimension_semantics = [#tpu.dimension_semantics<arbitrary>], iteration_bounds = array<i64: 1>, scalar_prefetch = 0 : i64, scratch_operands = 0 : i64, tpu.core_type = #tpu.core_type<tc>, window_params = [{transform_indices = @transform_0, window_bounds = array<i64: 8, 128>}, {pipeline_mode = #tpu.pipeline_mode<synchronous>, transform_indices = @transform_1, window_bounds = array<i64: 1, 128>}, {pipeline_mode = #tpu.pipeline_mode<synchronous>, transform_indices = @transform_2, window_bounds = array<i64: 1, 128>}, {pipeline_mode = #tpu.pipeline_mode<synchronous>, transform_indices = @transform_3, window_bounds = array<i64: 128, 128>}, {transform_indices = @transform_4, window_bounds = array<i64: 8, 128>}, {pipeline_mode = #tpu.pipeline_mode<synchronous>, transform_indices = @transform_5, window_bounds = array<i64: 2, 128>}]} {
    %c0 = arith.constant 0 : index
    %c0_0 = arith.constant 0 : index
    %0 = vector.load %arg1[%c0, %c0_0] : memref<8x128xf32, #tpu.memory_space<vmem>>, vector<8x128xf32>
    %c0_1 = arith.constant 0 : index
    %c0_2 = arith.constant 0 : index
    %1 = vector.load %arg2[%c0_1, %c0_2] : memref<1x128xf32, #tpu.memory_space<vmem>>, vector<1x128xf32>
    %2 = vector.broadcast %1 : vector<1x128xf32> to vector<8x128xf32>
    %3 = arith.mulf %0, %2 : vector<8x128xf32>
    %c0_3 = arith.constant 0 : index
    %c0_4 = arith.constant 0 : index
    %4 = vector.load %arg3[%c0_3, %c0_4] : memref<1x128xf32, #tpu.memory_space<vmem>>, vector<1x128xf32>
    %5 = vector.broadcast %4 : vector<1x128xf32> to vector<8x128xf32>
    %6 = arith.addf %3, %5 : vector<8x128xf32>
    %cst = arith.constant 2.000000e-01 : f32
    %7 = vector.broadcast %cst : f32 to vector<8x128xf32>
    %8 = arith.mulf %7, %6 : vector<8x128xf32>
    %9 = arith.maximumf %6, %8 : vector<8x128xf32>
    %c0_5 = arith.constant 0 : index
    %c0_6 = arith.constant 0 : index
    %10 = vector.load %arg4[%c0_5, %c0_6] : memref<128x128xf32, #tpu.memory_space<vmem>>, vector<128x128xf32>
    %cst_7 = arith.constant dense<0.000000e+00> : vector<8x128xf32>
    %11 = tpu.matmul %9, %10, %cst_7 {dimension_numbers = #tpu.dot_dimension_numbers<[1], [0], [0], [1], [0, 0, 1, 1], [], []>} : vector<8x128xf32>, vector<128x128xf32>, vector<8x128xf32> -> vector<8x128xf32>
    %c0_i32 = arith.constant 0 : i32
    %12 = arith.cmpi eq, %arg0, %c0_i32 : i32
    %13 = arith.extui %12 : i1 to i32
    %c0_i32_8 = arith.constant 0 : i32
    %14 = arith.cmpi ne, %13, %c0_i32_8 : i32
    scf.if %14 {
      %cst_17 = arith.constant 0.000000e+00 : f32
      %25 = vector.broadcast %cst_17 : f32 to vector<2x128xf32>
      %c0_18 = arith.constant 0 : index
      %c0_19 = arith.constant 0 : index
      %26 = vector.load %arg6[%c0_18, %c0_19] : memref<2x128xf32, #tpu.memory_space<vmem>>, vector<2x128xf32>
      tpu.vector_store %arg6[%c0_18, %c0_19], %25 {strides = array<i32>} : memref<2x128xf32, #tpu.memory_space<vmem>>, vector<2x128xf32>,
    } else {
    }
    %c0_9 = arith.constant 0 : index
    %c0_10 = arith.constant 0 : index
    %15 = vector.load %arg6[%c0_9, %c0_10] : memref<2x128xf32, #tpu.memory_space<vmem>>, vector<2x128xf32>
    %cst_11 = arith.constant dense<0.000000e+00> : vector<128xf32>
    %16 = vector.multi_reduction <add>, %11, %cst_11 [0] : vector<8x128xf32> to vector<128xf32>
    %17 = vector.shape_cast %16 : vector<128xf32> to vector<1x128xf32>
    %18 = arith.mulf %11, %11 : vector<8x128xf32>
    %cst_12 = arith.constant dense<0.000000e+00> : vector<128xf32>
    %19 = vector.multi_reduction <add>, %18, %cst_12 [0] : vector<8x128xf32> to vector<128xf32>
    %20 = vector.shape_cast %19 : vector<128xf32> to vector<1x128xf32>
    %21 = tpu.concatenate %17, %20 in 0 : vector<1x128xf32>, vector<1x128xf32> -> vector<2x128xf32>
    %22 = arith.addf %15, %21 : vector<2x128xf32>
    %c0_13 = arith.constant 0 : index
    %c0_14 = arith.constant 0 : index
    %23 = vector.load %arg6[%c0_13, %c0_14] : memref<2x128xf32, #tpu.memory_space<vmem>>, vector<2x128xf32>
    tpu.vector_store %arg6[%c0_13, %c0_14], %22 {strides = array<i32>} : memref<2x128xf32, #tpu.memory_space<vmem>>, vector<2x128xf32>,
    %c0_15 = arith.constant 0 : index
    %c0_16 = arith.constant 0 : index
    %24 = vector.load %arg5[%c0_15, %c0_16] : memref<8x128xf32, #tpu.memory_space<vmem>>, vector<8x128xf32>
    tpu.vector_store %arg5[%c0_15, %c0_16], %11 {strides = array<i32>} : memref<8x128xf32, #tpu.memory_space<vmem>>, vector<8x128xf32>,
    return
  }
  func.func @transform_0(%arg0: i32) -> (i32, i32) {
    %c0_i32 = arith.constant 0 : i32
    %c0_i32_0 = arith.constant 0 : i32
    return %arg0, %c0_i32 : i32, i32
  }
  func.func @transform_1(%arg0: i32) -> (i32, i32) {
    %c0_i32 = arith.constant 0 : i32
    %c0_i32_0 = arith.constant 0 : i32
    %c0_i32_1 = arith.constant 0 : i32
    return %c0_i32, %c0_i32_0 : i32, i32
  }
  func.func @transform_2(%arg0: i32) -> (i32, i32) {
    %c0_i32 = arith.constant 0 : i32
    %c0_i32_0 = arith.constant 0 : i32
    %c0_i32_1 = arith.constant 0 : i32
    return %c0_i32, %c0_i32_0 : i32, i32
  }
  func.func @transform_3(%arg0: i32) -> (i32, i32) {
    %c0_i32 = arith.constant 0 : i32
    %c0_i32_0 = arith.constant 0 : i32
    %c0_i32_1 = arith.constant 0 : i32
    return %c0_i32, %c0_i32_0 : i32, i32
  }
  func.func @transform_4(%arg0: i32) -> (i32, i32) {
    %c0_i32 = arith.constant 0 : i32
    %c0_i32_0 = arith.constant 0 : i32
    return %arg0, %c0_i32 : i32, i32
  }
  func.func @transform_5(%arg0: i32) -> (i32, i32) {
    %c0_i32 = arith.constant 0 : i32
    %c0_i32_0 = arith.constant 0 : i32
    %c0_i32_1 = arith.constant 0 : i32
    return %c0_i32, %c0_i32_0 : i32, i32
  }
}

module attributes {stable_mosaic.version = 11 : i64} {
  func.func @_first_layer_kernel(%arg0: i32, %arg1: memref<8x128xf32, #tpu.memory_space<vmem>>, %arg2: memref<128x128xf32, #tpu.memory_space<vmem>>, %arg3: memref<8x128xf32, #tpu.memory_space<vmem>>, %arg4: memref<2x128xf32, #tpu.memory_space<vmem>>) attributes {dimension_semantics = [#tpu.dimension_semantics<arbitrary>], iteration_bounds = array<i64: 1>, scalar_prefetch = 0 : i64, scratch_operands = 0 : i64, tpu.core_type = #tpu.core_type<tc>, window_params = [{transform_indices = @transform_0, window_bounds = array<i64: 8, 128>}, {pipeline_mode = #tpu.pipeline_mode<synchronous>, transform_indices = @transform_1, window_bounds = array<i64: 128, 128>}, {transform_indices = @transform_2, window_bounds = array<i64: 8, 128>}, {pipeline_mode = #tpu.pipeline_mode<synchronous>, transform_indices = @transform_3, window_bounds = array<i64: 2, 128>}]} {
    %c0 = arith.constant 0 : index
    %c0_0 = arith.constant 0 : index
    %0 = vector.load %arg1[%c0, %c0_0] : memref<8x128xf32, #tpu.memory_space<vmem>>, vector<8x128xf32>
    %c0_1 = arith.constant 0 : index
    %c0_2 = arith.constant 0 : index
    %1 = vector.load %arg2[%c0_1, %c0_2] : memref<128x128xf32, #tpu.memory_space<vmem>>, vector<128x128xf32>
    %cst = arith.constant dense<0.000000e+00> : vector<8x128xf32>
    %2 = tpu.matmul %0, %1, %cst {dimension_numbers = #tpu.dot_dimension_numbers<[1], [0], [0], [1], [0, 0, 1, 1], [], []>} : vector<8x128xf32>, vector<128x128xf32>, vector<8x128xf32> -> vector<8x128xf32>
    %c0_i32 = arith.constant 0 : i32
    %3 = arith.cmpi eq, %arg0, %c0_i32 : i32
    %4 = arith.extui %3 : i1 to i32
    %c0_i32_3 = arith.constant 0 : i32
    %5 = arith.cmpi ne, %4, %c0_i32_3 : i32
    scf.if %5 {
      %cst_12 = arith.constant 0.000000e+00 : f32
      %16 = vector.broadcast %cst_12 : f32 to vector<2x128xf32>
      %c0_13 = arith.constant 0 : index
      %c0_14 = arith.constant 0 : index
      %17 = vector.load %arg4[%c0_13, %c0_14] : memref<2x128xf32, #tpu.memory_space<vmem>>, vector<2x128xf32>
      tpu.vector_store %arg4[%c0_13, %c0_14], %16 {strides = array<i32>} : memref<2x128xf32, #tpu.memory_space<vmem>>, vector<2x128xf32>,
    } else {
    }
    %c0_4 = arith.constant 0 : index
    %c0_5 = arith.constant 0 : index
    %6 = vector.load %arg4[%c0_4, %c0_5] : memref<2x128xf32, #tpu.memory_space<vmem>>, vector<2x128xf32>
    %cst_6 = arith.constant dense<0.000000e+00> : vector<128xf32>
    %7 = vector.multi_reduction <add>, %2, %cst_6 [0] : vector<8x128xf32> to vector<128xf32>
    %8 = vector.shape_cast %7 : vector<128xf32> to vector<1x128xf32>
    %9 = arith.mulf %2, %2 : vector<8x128xf32>
    %cst_7 = arith.constant dense<0.000000e+00> : vector<128xf32>
    %10 = vector.multi_reduction <add>, %9, %cst_7 [0] : vector<8x128xf32> to vector<128xf32>
    %11 = vector.shape_cast %10 : vector<128xf32> to vector<1x128xf32>
    %12 = tpu.concatenate %8, %11 in 0 : vector<1x128xf32>, vector<1x128xf32> -> vector<2x128xf32>
    %13 = arith.addf %6, %12 : vector<2x128xf32>
    %c0_8 = arith.constant 0 : index
    %c0_9 = arith.constant 0 : index
    %14 = vector.load %arg4[%c0_8, %c0_9] : memref<2x128xf32, #tpu.memory_space<vmem>>, vector<2x128xf32>
    tpu.vector_store %arg4[%c0_8, %c0_9], %13 {strides = array<i32>} : memref<2x128xf32, #tpu.memory_space<vmem>>, vector<2x128xf32>,
    %c0_10 = arith.constant 0 : index
    %c0_11 = arith.constant 0 : index
    %15 = vector.load %arg3[%c0_10, %c0_11] : memref<8x128xf32, #tpu.memory_space<vmem>>, vector<8x128xf32>
    tpu.vector_store %arg3[%c0_10, %c0_11], %2 {strides = array<i32>} : memref<8x128xf32, #tpu.memory_space<vmem>>, vector<8x128xf32>,
    return
  }
  func.func @transform_0(%arg0: i32) -> (i32, i32) {
    %c0_i32 = arith.constant 0 : i32
    %c0_i32_0 = arith.constant 0 : i32
    return %arg0, %c0_i32 : i32, i32
  }
  func.func @transform_1(%arg0: i32) -> (i32, i32) {
    %c0_i32 = arith.constant 0 : i32
    %c0_i32_0 = arith.constant 0 : i32
    %c0_i32_1 = arith.constant 0 : i32
    return %c0_i32, %c0_i32_0 : i32, i32
  }
  func.func @transform_2(%arg0: i32) -> (i32, i32) {
    %c0_i32 = arith.constant 0 : i32
    %c0_i32_0 = arith.constant 0 : i32
    return %arg0, %c0_i32 : i32, i32
  }
  func.func @transform_3(%arg0: i32) -> (i32, i32) {
    %c0_i32 = arith.constant 0 : i32
    %c0_i32_0 = arith.constant 0 : i32
    %c0_i32_1 = arith.constant 0 : i32
    return %c0_i32, %c0_i32_0 : i32, i32
  }
}

module attributes {stable_mosaic.version = 11 : i64} {
  func.func @_last_layer_kernel(%arg0: i32, %arg1: memref<8x128xf32, #tpu.memory_space<vmem>>, %arg2: memref<1x128xf32, #tpu.memory_space<vmem>>, %arg3: memref<1x128xf32, #tpu.memory_space<vmem>>, %arg4: memref<128x128xf32, #tpu.memory_space<vmem>>, %arg5: memref<1x128xf32, #tpu.memory_space<vmem>>, %arg6: memref<8x128xf32, #tpu.memory_space<vmem>>) attributes {dimension_semantics = [#tpu.dimension_semantics<parallel>], iteration_bounds = array<i64: 1>, scalar_prefetch = 0 : i64, scratch_operands = 0 : i64, tpu.core_type = #tpu.core_type<tc>, window_params = [{transform_indices = @transform_0, window_bounds = array<i64: 8, 128>}, {pipeline_mode = #tpu.pipeline_mode<synchronous>, transform_indices = @transform_1, window_bounds = array<i64: 1, 128>}, {pipeline_mode = #tpu.pipeline_mode<synchronous>, transform_indices = @transform_2, window_bounds = array<i64: 1, 128>}, {pipeline_mode = #tpu.pipeline_mode<synchronous>, transform_indices = @transform_3, window_bounds = array<i64: 128, 128>}, {pipeline_mode = #tpu.pipeline_mode<synchronous>, transform_indices = @transform_4, window_bounds = array<i64: 1, 128>}, {transform_indices = @transform_5, window_bounds = array<i64: 8, 128>}]} {
    %c0 = arith.constant 0 : index
    %c0_0 = arith.constant 0 : index
    %0 = vector.load %arg1[%c0, %c0_0] : memref<8x128xf32, #tpu.memory_space<vmem>>, vector<8x128xf32>
    %c0_1 = arith.constant 0 : index
    %c0_2 = arith.constant 0 : index
    %1 = vector.load %arg2[%c0_1, %c0_2] : memref<1x128xf32, #tpu.memory_space<vmem>>, vector<1x128xf32>
    %2 = vector.broadcast %1 : vector<1x128xf32> to vector<8x128xf32>
    %3 = arith.mulf %0, %2 : vector<8x128xf32>
    %c0_3 = arith.constant 0 : index
    %c0_4 = arith.constant 0 : index
    %4 = vector.load %arg3[%c0_3, %c0_4] : memref<1x128xf32, #tpu.memory_space<vmem>>, vector<1x128xf32>
    %5 = vector.broadcast %4 : vector<1x128xf32> to vector<8x128xf32>
    %6 = arith.addf %3, %5 : vector<8x128xf32>
    %cst = arith.constant 2.000000e-01 : f32
    %7 = vector.broadcast %cst : f32 to vector<8x128xf32>
    %8 = arith.mulf %7, %6 : vector<8x128xf32>
    %9 = arith.maximumf %6, %8 : vector<8x128xf32>
    %c0_5 = arith.constant 0 : index
    %c0_6 = arith.constant 0 : index
    %10 = vector.load %arg4[%c0_5, %c0_6] : memref<128x128xf32, #tpu.memory_space<vmem>>, vector<128x128xf32>
    %cst_7 = arith.constant dense<0.000000e+00> : vector<8x128xf32>
    %11 = tpu.matmul %9, %10, %cst_7 {dimension_numbers = #tpu.dot_dimension_numbers<[1], [0], [0], [1], [0, 0, 1, 1], [], []>} : vector<8x128xf32>, vector<128x128xf32>, vector<8x128xf32> -> vector<8x128xf32>
    %c0_8 = arith.constant 0 : index
    %c0_9 = arith.constant 0 : index
    %12 = vector.load %arg5[%c0_8, %c0_9] : memref<1x128xf32, #tpu.memory_space<vmem>>, vector<1x128xf32>
    %13 = vector.broadcast %12 : vector<1x128xf32> to vector<8x128xf32>
    %14 = arith.addf %11, %13 : vector<8x128xf32>
    %15 = math.tanh %14 : vector<8x128xf32>
    %c0_10 = arith.constant 0 : index
    %c0_11 = arith.constant 0 : index
    %16 = vector.load %arg6[%c0_10, %c0_11] : memref<8x128xf32, #tpu.memory_space<vmem>>, vector<8x128xf32>
    tpu.vector_store %arg6[%c0_10, %c0_11], %15 {strides = array<i32>} : memref<8x128xf32, #tpu.memory_space<vmem>>, vector<8x128xf32>,
    return
  }
  func.func @transform_0(%arg0: i32) -> (i32, i32) {
    %c0_i32 = arith.constant 0 : i32
    %c0_i32_0 = arith.constant 0 : i32
    return %arg0, %c0_i32 : i32, i32
  }
  func.func @transform_1(%arg0: i32) -> (i32, i32) {
    %c0_i32 = arith.constant 0 : i32
    %c0_i32_0 = arith.constant 0 : i32
    %c0_i32_1 = arith.constant 0 : i32
    return %c0_i32, %c0_i32_0 : i32, i32
  }
  func.func @transform_2(%arg0: i32) -> (i32, i32) {
    %c0_i32 = arith.constant 0 : i32
    %c0_i32_0 = arith.constant 0 : i32
    %c0_i32_1 = arith.constant 0 : i32
    return %c0_i32, %c0_i32_0 : i32, i32
  }
  func.func @transform_3(%arg0: i32) -> (i32, i32) {
    %c0_i32 = arith.constant 0 : i32
    %c0_i32_0 = arith.constant 0 : i32
    %c0_i32_1 = arith.constant 0 : i32
    return %c0_i32, %c0_i32_0 : i32, i32
  }
  func.func @transform_4(%arg0: i32) -> (i32, i32) {
    %c0_i32 = arith.constant 0 : i32
    %c0_i32_0 = arith.constant 0 : i32
    %c0_i32_1 = arith.constant 0 : i32
    return %c0_i32, %c0_i32_0 : i32, i32
  }
  func.func @transform_5(%arg0: i32) -> (i32, i32) {
    %c0_i32 = arith.constant 0 : i32
    %c0_i32_0 = arith.constant 0 : i32
    return %arg0, %c0_i32 : i32, i32
  }
}

</mosaic_0001>

<llo_original>
// kernel: generator_forward.5
$region0: #{generator_forward.5}
  #allocation0 [shape = 'u32[]', space=smem, size = 0x4, offset = 0x4, fixed_abs, tag = 'smem constant byte address 0x4 - core index']
  #allocation1 [shape = 'u32[144,128]{1,0:T(1,128)}', space=vmem, size = 0x12000, scoped, tag = 'internal scratch']
  %s0 = inlined_call_operand.vmem [shape: f32[8,128], index: 0, kind: input, shape index: {}]
  %s1 = inlined_call_operand.vmem [shape: f32[1,128], index: 1, kind: input, shape index: {}]
  %s2 = inlined_call_operand.vmem [shape: f32[1,128], index: 2, kind: input, shape index: {}]
  %s3 = inlined_call_operand.vmem [shape: f32[128,128], index: 3, kind: input, shape index: {}]
  %s4 = inlined_call_operand.vmem [shape: f32[8,128], index: 4, kind: output, shape index: {0}]
  %s5 = inlined_call_operand.vmem [shape: f32[2,128], index: 5, kind: output, shape index: {1}]
  %6 = xla_tuple %s4, %s5
  %s7 = sld [smem:[#allocation0]]
  $region38: #{generator_forward.5} parent=0
    _
  %s9 = ssub.s32 1, %s7
  %s10 = scalar_select 0, %s9, %s7
  // Predicated region
  $region2: #{generator_forward.5} parent=0 // pred_check
    _
  $region3: #{generator_forward.5} parent=0 // pred_check_branch
    %12 = sbr.rel (0) target = $region5
  $region4: #{generator_forward.5} parent=0 // pred_region
    _
  $region5: #{generator_forward.5} parent=0 // pred_fallthru
    _
  // Predicated region
  $region6: #{generator_forward.5} parent=0 // pred_check
    _
  $region7: #{generator_forward.5} parent=0 // pred_check_branch
    %14 = sbr.rel (0) target = $region9
  $region8: #{generator_forward.5} parent=0 // pred_region
    _
  $region9: #{generator_forward.5} parent=0 // pred_fallthru
    _
  // Predicated region
  $region10: #{generator_forward.5} parent=0 // pred_check
    _
  $region11: #{generator_forward.5} parent=0 // pred_check_branch
    %16 = sbr.rel (0) target = $region13
  $region12: #{generator_forward.5} parent=0 // pred_region
    _
  $region13: #{generator_forward.5} parent=0 // pred_fallthru
    _
  // Predicated region
  $region14: #{generator_forward.5} parent=0 // pred_check
    _
  $region15: #{generator_forward.5} parent=0 // pred_check_branch
    %18 = sbr.rel (0) target = $region17
  $region16: #{generator_forward.5} parent=0 // pred_region
    _
  $region17: #{generator_forward.5} parent=0 // pred_fallthru
    _
  %v19 = vld [vmem:[%s0] sm:$0xff]
  %v20 = vld [vmem:[%s1] sm:$0x1]
  %v22 = vlaneseq
  %v23 = vshrl.u32 %v22, 7
  %v24 = vsub.s32 0, %v23
  %v25 = vrot.slane %v20, %v24
  %v27 = vmul.f32 %v19, %v25
  %v28 = vld [vmem:[%s2] sm:$0x1]
  %v30 = vlaneseq
  %v31 = vshrl.u32 %v30, 7
  %v32 = vsub.s32 0, %v31
  %v33 = vrot.slane %v28, %v32
  %v35 = vadd.f32 %v27, %v33
  %v36 = vmul.f32 %v35, 0.2
  %v37 = vmax.f32 %v35, %v36
  %v38 = vld [vmem:[%s3] sm:$0xff]
  %v39 = vld [vmem:[%s3 + $0x8] sm:$0xff]
  %v40 = vld [vmem:[%s3 + $0x10] sm:$0xff]
  %v41 = vld [vmem:[%s3 + $0x18] sm:$0xff]
  %v42 = vld [vmem:[%s3 + $0x20] sm:$0xff]
  %v43 = vld [vmem:[%s3 + $0x28] sm:$0xff]
  %v44 = vld [vmem:[%s3 + $0x30] sm:$0xff]
  %v45 = vld [vmem:[%s3 + $0x38] sm:$0xff]
  %v46 = vld [vmem:[%s3 + $0x40] sm:$0xff]
  %v47 = vld [vmem:[%s3 + $0x48] sm:$0xff]
  %v48 = vld [vmem:[%s3 + $0x50] sm:$0xff]
  %v49 = vld [vmem:[%s3 + $0x58] sm:$0xff]
  %v50 = vld [vmem:[%s3 + $0x60] sm:$0xff]
  %v51 = vld [vmem:[%s3 + $0x68] sm:$0xff]
  %v52 = vld [vmem:[%s3 + $0x70] sm:$0xff]
  %v53 = vld [vmem:[%s3 + $0x78] sm:$0xff]
  %54 = vmatprep.subr.mxu0 0.0
  %55 = vmatpush1.msra.mxu0 %v53
  %56 = vmatprep.subr.mxu0 0.0
  %57 = vmatpush1.msra.mxu0 %v52
  %58 = vmatprep.subr.mxu0 0.0
  %59 = vmatpush1.msra.mxu0 %v51
  %60 = vmatprep.subr.mxu0 0.0
  %61 = vmatpush1.msra.mxu0 %v50
  %62 = vmatprep.subr.mxu0 0.0
  %63 = vmatpush1.msra.mxu0 %v49
  %64 = vmatprep.subr.mxu0 0.0
  %65 = vmatpush1.msra.mxu0 %v48
  %66 = vmatprep.subr.mxu0 0.0
  %67 = vmatpush1.msra.mxu0 %v47
  %68 = vmatprep.subr.mxu0 0.0
  %69 = vmatpush1.msra.mxu0 %v46
  %70 = vmatprep.subr.mxu0 0.0
  %71 = vmatpush1.msra.mxu0 %v45
  %72 = vmatprep.subr.mxu0 0.0
  %73 = vmatpush1.msra.mxu0 %v44
  %74 = vmatprep.subr.mxu0 0.0
  %75 = vmatpush1.msra.mxu0 %v43
  %76 = vmatprep.subr.mxu0 0.0
  %77 = vmatpush1.msra.mxu0 %v42
  %78 = vmatprep.subr.mxu0 0.0
  %79 = vmatpush1.msra.mxu0 %v41
  %80 = vmatprep.subr.mxu0 0.0
  %81 = vmatpush1.msra.mxu0 %v40
  %82 = vmatprep.subr.mxu0 0.0
  %83 = vmatpush1.msra.mxu0 %v39
  %84 = vmatprep.subr.mxu0 0.0
  %85 = vmatpush1.msra.mxu0 %v38
  %86 = vmatprep.subr.mxu0 0.0
  %87 = vmatpush2.msra.mxu0 0.0
  %88 = vmatprep.subr.mxu0 0.0
  %89 = vmatpush2.msra.mxu0 0.0
  %90 = vmatprep.subr.mxu0 0.0
  %91 = vmatpush2.msra.mxu0 0.0
  %92 = vmatprep.subr.mxu0 0.0
  %93 = vmatpush2.msra.mxu0 0.0
  %94 = vmatprep.subr.mxu0 0.0
  %95 = vmatpush2.msra.mxu0 0.0
  %96 = vmatprep.subr.mxu0 0.0
  %97 = vmatpush2.msra.mxu0 0.0
  %98 = vmatprep.subr.mxu0 0.0
  %99 = vmatpush2.msra.mxu0 0.0
  %100 = vmatprep.subr.mxu0 0.0
  %101 = vmatpush2.msra.mxu0 0.0
  %102 = vmatprep.subr.mxu0 0.0
  %103 = vmatpush2.msra.mxu0 0.0
  %104 = vmatprep.subr.mxu0 0.0
  %105 = vmatpush2.msra.mxu0 0.0
  %106 = vmatprep.subr.mxu0 0.0
  %107 = vmatpush2.msra.mxu0 0.0
  %108 = vmatprep.subr.mxu0 0.0
  %109 = vmatpush2.msra.mxu0 0.0
  %110 = vmatprep.subr.mxu0 0.0
  %111 = vmatpush2.msra.mxu0 0.0
  %112 = vmatprep.subr.mxu0 0.0
  %113 = vmatpush2.msra.mxu0 0.0
  %114 = vmatprep.subr.mxu0 0.0
  %115 = vmatpush2.msra.mxu0 0.0
  %116 = vmatprep.subr.mxu0 0.0
  %117 = vmatpush2.msra.mxu0 0.0
  %118 = vmatprep.mubr.f32.mxu0 0.0
  %119 = vmatmul.mubr.f32.gmra.mxu0 %v37
  %v120 = vpop.f32.mrf.mxu0
  %v121 = vadd.f32 0.0, %v120
  %v122 = vpop.f32.mrf.mxu0
  %123 = vdwg.mxu0
  %p124 = scmp.eq.s32.totalorder 0, 0
  // Predicated region
  $region18: #{generator_forward.5} parent=0 // pred_check
    %p125 = pneg %p124
  $region19: #{generator_forward.5} parent=0 // pred_check_branch
    %127 = sbr.rel (%p125) target = $region21
  $region20: #{generator_forward.5} parent=0 // pred_region
    %128 = vst [vmem:[%s5] sm:$0x3] 0.0
  $region21: #{generator_forward.5} parent=0 // pred_fallthru
    _
  %v129 = vld [vmem:[%s5] sm:$0x3]
  %v130 = vrot.slane %v121, 4
  %v131 = vadd.f32 %v121, %v130
  %v132 = vrot.slane %v131, 2
  %v133 = vadd.f32 %v131, %v132
  %v134 = vrot.slane %v133, 1
  %v135 = vadd.f32 %v133, %v134
  %v136 = vmul.f32 %v121, %v121
  %v137 = vrot.slane %v136, 4
  %v138 = vadd.f32 %v136, %v137
  %v139 = vrot.slane %v138, 2
  %v140 = vadd.f32 %v138, %v139
  %v141 = vrot.slane %v140, 1
  %v142 = vadd.f32 %v140, %v141
  %vm143 = vcmask 1040384
  %v144 = vsel %vm143, %v135, %v142
  %v145 = vadd.f32 %v129, %v144
  %146 = vst [vmem:[%s5] sm:$0x3] %v145
  %147 = vst [vmem:[%s4] sm:$0xff] %v121
  // Predicated region
  $region22: #{generator_forward.5} parent=0 // pred_check
    _
  $region23: #{generator_forward.5} parent=0 // pred_check_branch
    %149 = sbr.rel (0) target = $region25
  $region24: #{generator_forward.5} parent=0 // pred_region
    _
  $region25: #{generator_forward.5} parent=0 // pred_fallthru
    _
  // Predicated region
  $region26: #{generator_forward.5} parent=0 // pred_check
    _
  $region27: #{generator_forward.5} parent=0 // pred_check_branch
    %151 = sbr.rel (0) target = $region29
  $region28: #{generator_forward.5} parent=0 // pred_region
    _
  $region29: #{generator_forward.5} parent=0 // pred_fallthru
    _
  // Predicated region
  $region30: #{generator_forward.5} parent=0 // pred_check
    _
  $region31: #{generator_forward.5} parent=0 // pred_check_branch
    %153 = sbr.rel (0) target = $region33
  $region32: #{generator_forward.5} parent=0 // pred_region
    _
  $region33: #{generator_forward.5} parent=0 // pred_fallthru
    _
  // Predicated region
  $region34: #{generator_forward.5} parent=0 // pred_check
    _
  $region35: #{generator_forward.5} parent=0 // pred_check_branch
    %155 = sbr.rel (0) target = $region37
  $region36: #{generator_forward.5} parent=0 // pred_region
    _
  $region37: #{generator_forward.5} parent=0 // pred_fallthru
    _

// kernel: generator_forward.4
$region0: #{generator_forward.4}
  #allocation0 [shape = 'u32[]', space=smem, size = 0x4, offset = 0x4, fixed_abs, tag = 'smem constant byte address 0x4 - core index']
  #allocation1 [shape = 'u32[144,128]{1,0:T(1,128)}', space=vmem, size = 0x12000, scoped, tag = 'internal scratch']
  %s0 = inlined_call_operand.vmem [shape: f32[8,128], index: 0, kind: input, shape index: {}]
  %s1 = inlined_call_operand.hbm [shape: f32[128,128], index: 1, kind: input, shape index: {}]
  %s2 = inlined_call_operand.vmem [shape: f32[8,128], index: 2, kind: output, shape index: {0}]
  %s3 = inlined_call_operand.vmem [shape: f32[2,128], index: 3, kind: output, shape index: {1}]
  %4 = xla_tuple %s2, %s3
  %s5 = sld [smem:[#allocation0]]
  $region34: #{generator_forward.4} parent=0
    _
  %s7 = ssub.s32 1, %s5
  %s8 = scalar_select 0, %s7, %s5
  $region1: #{generator_forward.4} parent=0
    #allocation2 [shape = 'u8[65536]{0}', space=vmem, size = 0x10000, scoped, tag = 'input window, operand 1, single buffered']
    #allocation3 [shape = 's32[1]{0}', space=sflag, size = 0x4, scoped, tag = 'scoped memory for generator_forward.4']
    %9 = vsyncpa [#allocation3], 0
    // Predicated region
    $region2: #{generator_forward.4} parent=1 // pred_check
      _
    $region3: #{generator_forward.4} parent=1 // pred_check_branch
      %11 = sbr.rel (0) target = $region5
    $region4: #{generator_forward.4} parent=1 // pred_region
      _
    $region5: #{generator_forward.4} parent=1 // pred_fallthru
      _
    // Predicated region
    $region6: #{generator_forward.4} parent=1 // pred_check
      _
    $region7: #{generator_forward.4} parent=1 // pred_check_branch
      %13 = sbr.rel (0) target = $region9
    $region8: #{generator_forward.4} parent=1 // pred_region
      %s15 = ssub.s32 2048, 2048
      %16 = vsyncadd [#allocation3], %s15
      %s17 = sshll.u32 [#allocation2], 4
      %s18 = int_to_ptr.vmem [resolvable:$true] %s17
      %23 = dma.hbm_to_vmem [thread:$0]  %s1, 2048, %s18, [#allocation3], 128, 128, 8
    $region9: #{generator_forward.4} parent=1 // pred_fallthru
      _
    // Predicated region
    $region10: #{generator_forward.4} parent=1 // pred_check
      _
    $region11: #{generator_forward.4} parent=1 // pred_check_branch
      %25 = sbr.rel (0) target = $region13
    $region12: #{generator_forward.4} parent=1 // pred_region
      %26 = dma.done [#allocation3], 2048
    $region13: #{generator_forward.4} parent=1 // pred_fallthru
      _
    %v27 = vld [vmem:[%s0] sm:$0xff]
    %v28 = vld [vmem:[#allocation2] sm:$0xff]
    %v29 = vld [vmem:[#allocation2 + $0x8] sm:$0xff]
    %v30 = vld [vmem:[#allocation2 + $0x10] sm:$0xff]
    %v31 = vld [vmem:[#allocation2 + $0x18] sm:$0xff]
    %v32 = vld [vmem:[#allocation2 + $0x20] sm:$0xff]
    %v33 = vld [vmem:[#allocation2 + $0x28] sm:$0xff]
    %v34 = vld [vmem:[#allocation2 + $0x30] sm:$0xff]
    %v35 = vld [vmem:[#allocation2 + $0x38] sm:$0xff]
    %v36 = vld [vmem:[#allocation2 + $0x40] sm:$0xff]
    %v37 = vld [vmem:[#allocation2 + $0x48] sm:$0xff]
    %v38 = vld [vmem:[#allocation2 + $0x50] sm:$0xff]
    %v39 = vld [vmem:[#allocation2 + $0x58] sm:$0xff]
    %v40 = vld [vmem:[#allocation2 + $0x60] sm:$0xff]
    %v41 = vld [vmem:[#allocation2 + $0x68] sm:$0xff]
    %v42 = vld [vmem:[#allocation2 + $0x70] sm:$0xff]
    %v43 = vld [vmem:[#allocation2 + $0x78] sm:$0xff]
    %44 = vmatprep.subr.mxu0 0.0
    %45 = vmatpush1.msra.mxu0 %v43
    %46 = vmatprep.subr.mxu0 0.0
    %47 = vmatpush1.msra.mxu0 %v42
    %48 = vmatprep.subr.mxu0 0.0
    %49 = vmatpush1.msra.mxu0 %v41
    %50 = vmatprep.subr.mxu0 0.0
    %51 = vmatpush1.msra.mxu0 %v40
    %52 = vmatprep.subr.mxu0 0.0
    %53 = vmatpush1.msra.mxu0 %v39
    %54 = vmatprep.subr.mxu0 0.0
    %55 = vmatpush1.msra.mxu0 %v38
    %56 = vmatprep.subr.mxu0 0.0
    %57 = vmatpush1.msra.mxu0 %v37
    %58 = vmatprep.subr.mxu0 0.0
    %59 = vmatpush1.msra.mxu0 %v36
    %60 = vmatprep.subr.mxu0 0.0
    %61 = vmatpush1.msra.mxu0 %v35
    %62 = vmatprep.subr.mxu0 0.0
    %63 = vmatpush1.msra.mxu0 %v34
    %64 = vmatprep.subr.mxu0 0.0
    %65 = vmatpush1.msra.mxu0 %v33
    %66 = vmatprep.subr.mxu0 0.0
    %67 = vmatpush1.msra.mxu0 %v32
    %68 = vmatprep.subr.mxu0 0.0
    %69 = vmatpush1.msra.mxu0 %v31
    %70 = vmatprep.subr.mxu0 0.0
    %71 = vmatpush1.msra.mxu0 %v30
    %72 = vmatprep.subr.mxu0 0.0
    %73 = vmatpush1.msra.mxu0 %v29
    %74 = vmatprep.subr.mxu0 0.0
    %75 = vmatpush1.msra.mxu0 %v28
    %76 = vmatprep.subr.mxu0 0.0
    %77 = vmatpush2.msra.mxu0 0.0
    %78 = vmatprep.subr.mxu0 0.0
    %79 = vmatpush2.msra.mxu0 0.0
    %80 = vmatprep.subr.mxu0 0.0
    %81 = vmatpush2.msra.mxu0 0.0
    %82 = vmatprep.subr.mxu0 0.0
    %83 = vmatpush2.msra.mxu0 0.0
    %84 = vmatprep.subr.mxu0 0.0
    %85 = vmatpush2.msra.mxu0 0.0
    %86 = vmatprep.subr.mxu0 0.0
    %87 = vmatpush2.msra.mxu0 0.0
    %88 = vmatprep.subr.mxu0 0.0
    %89 = vmatpush2.msra.mxu0 0.0
    %90 = vmatprep.subr.mxu0 0.0
    %91 = vmatpush2.msra.mxu0 0.0
    %92 = vmatprep.subr.mxu0 0.0
    %93 = vmatpush2.msra.mxu0 0.0
    %94 = vmatprep.subr.mxu0 0.0
    %95 = vmatpush2.msra.mxu0 0.0
    %96 = vmatprep.subr.mxu0 0.0
    %97 = vmatpush2.msra.mxu0 0.0
    %98 = vmatprep.subr.mxu0 0.0
    %99 = vmatpush2.msra.mxu0 0.0
    %100 = vmatprep.subr.mxu0 0.0
    %101 = vmatpush2.msra.mxu0 0.0
    %102 = vmatprep.subr.mxu0 0.0
    %103 = vmatpush2.msra.mxu0 0.0
    %104 = vmatprep.subr.mxu0 0.0
    %105 = vmatpush2.msra.mxu0 0.0
    %106 = vmatprep.subr.mxu0 0.0
    %107 = vmatpush2.msra.mxu0 0.0
    %108 = vmatprep.mubr.f32.mxu0 0.0
    %109 = vmatmul.mubr.f32.gmra.mxu0 %v27
    %v110 = vpop.f32.mrf.mxu0
    %v111 = vadd.f32 0.0, %v110
    %v112 = vpop.f32.mrf.mxu0
    %113 = vdwg.mxu0
    %p114 = scmp.eq.s32.totalorder 0, 0
    // Predicated region
    $region14: #{generator_forward.4} parent=1 // pred_check
      %p115 = pneg %p114
    $region15: #{generator_forward.4} parent=1 // pred_check_branch
      %117 = sbr.rel (%p115) target = $region17
    $region16: #{generator_forward.4} parent=1 // pred_region
      %118 = vst [vmem:[%s3] sm:$0x3] 0.0
    $region17: #{generator_forward.4} parent=1 // pred_fallthru
      _
    %v119 = vld [vmem:[%s3] sm:$0x3]
    %v120 = vrot.slane %v111, 4
    %v121 = vadd.f32 %v111, %v120
    %v122 = vrot.slane %v121, 2
    %v123 = vadd.f32 %v121, %v122
    %v124 = vrot.slane %v123, 1
    %v125 = vadd.f32 %v123, %v124
    %v126 = vmul.f32 %v111, %v111
    %v127 = vrot.slane %v126, 4
    %v128 = vadd.f32 %v126, %v127
    %v129 = vrot.slane %v128, 2
    %v130 = vadd.f32 %v128, %v129
    %v131 = vrot.slane %v130, 1
    %v132 = vadd.f32 %v130, %v131
    %vm133 = vcmask 1040384
    %v134 = vsel %vm133, %v125, %v132
    %v135 = vadd.f32 %v119, %v134
    %136 = vst [vmem:[%s3] sm:$0x3] %v135
    %137 = vst [vmem:[%s2] sm:$0xff] %v111
    // Predicated region
    $region18: #{generator_forward.4} parent=1 // pred_check
      _
    $region19: #{generator_forward.4} parent=1 // pred_check_branch
      %139 = sbr.rel (0) target = $region21
    $region20: #{generator_forward.4} parent=1 // pred_region
      _
    $region21: #{generator_forward.4} parent=1 // pred_fallthru
      _
    // Predicated region
    $region22: #{generator_forward.4} parent=1 // pred_check
      _
    $region23: #{generator_forward.4} parent=1 // pred_check_branch
      %141 = sbr.rel (0) target = $region25
    $region24: #{generator_forward.4} parent=1 // pred_region
      _
    $region25: #{generator_forward.4} parent=1 // pred_fallthru
      _
    // Predicated region
    $region26: #{generator_forward.4} parent=1 // pred_check
      _
    $region27: #{generator_forward.4} parent=1 // pred_check_branch
      %143 = sbr.rel (0) target = $region29
    $region28: #{generator_forward.4} parent=1 // pred_region
      _
    $region29: #{generator_forward.4} parent=1 // pred_fallthru
      _
    // Predicated region
    $region30: #{generator_forward.4} parent=1 // pred_check
      _
    $region31: #{generator_forward.4} parent=1 // pred_check_branch
      %145 = sbr.rel (0) target = $region33
    $region32: #{generator_forward.4} parent=1 // pred_region
      _
    $region33: #{generator_forward.4} parent=1 // pred_fallthru
      _
    %146 = vsyncpa [#allocation3], 1

// kernel: generator_forward.7
$region0: #{generator_forward.7}
  #allocation0 [shape = 'u32[]', space=smem, size = 0x4, offset = 0x4, fixed_abs, tag = 'smem constant byte address 0x4 - core index']
  #allocation1 [shape = 'u32[144,128]{1,0:T(1,128)}', space=vmem, size = 0x12000, scoped, tag = 'internal scratch']
  %s0 = inlined_call_operand.vmem [shape: f32[8,128], index: 0, kind: input, shape index: {}]
  %s1 = inlined_call_operand.vmem [shape: f32[1,128], index: 1, kind: input, shape index: {}]
  %s2 = inlined_call_operand.vmem [shape: f32[1,128], index: 2, kind: input, shape index: {}]
  %s3 = inlined_call_operand.vmem [shape: f32[128,128], index: 3, kind: input, shape index: {}]
  %s4 = inlined_call_operand.vmem [shape: f32[1,128], index: 4, kind: input, shape index: {}]
  %s5 = inlined_call_operand.hbm [shape: f32[8,128], index: 5, kind: output, shape index: {}]
  %s6 = sld [smem:[#allocation0]]
  $region30: #{generator_forward.7} parent=0
    _
  %s8 = ssub.s32 1, %s6
  %s9 = scalar_select 0, %s8, %s6
  $region1: #{generator_forward.7} parent=0
    #allocation2 [shape = 'u8[4096]{0}', space=vmem, size = 0x1000, scoped, tag = 'output window, operand 0, single buffered']
    #allocation3 [shape = 's32[1]{0}', space=sflag, size = 0x4, scoped, tag = 'scoped memory for generator_forward.7']
    %10 = vsyncpa [#allocation3], 0
    // Predicated region
    $region2: #{generator_forward.7} parent=1 // pred_check
      _
    $region3: #{generator_forward.7} parent=1 // pred_check_branch
      %12 = sbr.rel (0) target = $region5
    $region4: #{generator_forward.7} parent=1 // pred_region
      _
    $region5: #{generator_forward.7} parent=1 // pred_fallthru
      _
    // Predicated region
    $region6: #{generator_forward.7} parent=1 // pred_check
      _
    $region7: #{generator_forward.7} parent=1 // pred_check_branch
      %14 = sbr.rel (0) target = $region9
    $region8: #{generator_forward.7} parent=1 // pred_region
      _
    $region9: #{generator_forward.7} parent=1 // pred_fallthru
      _
    // Predicated region
    $region10: #{generator_forward.7} parent=1 // pred_check
      _
    $region11: #{generator_forward.7} parent=1 // pred_check_branch
      %16 = sbr.rel (0) target = $region13
    $region12: #{generator_forward.7} parent=1 // pred_region
      _
    $region13: #{generator_forward.7} parent=1 // pred_fallthru
      _
    // Predicated region
    $region14: #{generator_forward.7} parent=1 // pred_check
      _
    $region15: #{generator_forward.7} parent=1 // pred_check_branch
      %18 = sbr.rel (0) target = $region17
    $region16: #{generator_forward.7} parent=1 // pred_region
      _
    $region17: #{generator_forward.7} parent=1 // pred_fallthru
      _
    // Predicated region
    $region18: #{generator_forward.7} parent=1 // pred_check
      _
    $region19: #{generator_forward.7} parent=1 // pred_check_branch
      %20 = sbr.rel (0) target = $region21
    $region20: #{generator_forward.7} parent=1 // pred_region
      _
    $region21: #{generator_forward.7} parent=1 // pred_fallthru
      _
    %v21 = vld [vmem:[%s0] sm:$0xff]
    %v22 = vld [vmem:[%s1] sm:$0x1]
    %v24 = vlaneseq
    %v25 = vshrl.u32 %v24, 7
    %v26 = vsub.s32 0, %v25
    %v27 = vrot.slane %v22, %v26
    %v29 = vmul.f32 %v21, %v27
    %v30 = vld [vmem:[%s2] sm:$0x1]
    %v32 = vlaneseq
    %v33 = vshrl.u32 %v32, 7
    %v34 = vsub.s32 0, %v33
    %v35 = vrot.slane %v30, %v34
    %v37 = vadd.f32 %v29, %v35
    %v38 = vmul.f32 %v37, 0.2
    %v39 = vmax.f32 %v37, %v38
    %v40 = vld [vmem:[%s3] sm:$0xff]
    %v41 = vld [vmem:[%s3 + $0x8] sm:$0xff]
    %v42 = vld [vmem:[%s3 + $0x10] sm:$0xff]
    %v43 = vld [vmem:[%s3 + $0x18] sm:$0xff]
    %v44 = vld [vmem:[%s3 + $0x20] sm:$0xff]
    %v45 = vld [vmem:[%s3 + $0x28] sm:$0xff]
    %v46 = vld [vmem:[%s3 + $0x30] sm:$0xff]
    %v47 = vld [vmem:[%s3 + $0x38] sm:$0xff]
    %v48 = vld [vmem:[%s3 + $0x40] sm:$0xff]
    %v49 = vld [vmem:[%s3 + $0x48] sm:$0xff]
    %v50 = vld [vmem:[%s3 + $0x50] sm:$0xff]
    %v51 = vld [vmem:[%s3 + $0x58] sm:$0xff]
    %v52 = vld [vmem:[%s3 + $0x60] sm:$0xff]
    %v53 = vld [vmem:[%s3 + $0x68] sm:$0xff]
    %v54 = vld [vmem:[%s3 + $0x70] sm:$0xff]
    %v55 = vld [vmem:[%s3 + $0x78] sm:$0xff]
    %v56 = vld [vmem:[%s4] sm:$0x1]
    %v58 = vlaneseq
    %v59 = vshrl.u32 %v58, 7
    %v60 = vsub.s32 0, %v59
    %v61 = vrot.slane %v56, %v60
    %63 = vmatprep.subr.mxu0 0.0
    %64 = vmatpush1.msra.mxu0 %v55
    %65 = vmatprep.subr.mxu0 0.0
    %66 = vmatpush1.msra.mxu0 %v54
    %67 = vmatprep.subr.mxu0 0.0
    %68 = vmatpush1.msra.mxu0 %v53
    %69 = vmatprep.subr.mxu0 0.0
    %70 = vmatpush1.msra.mxu0 %v52
    %71 = vmatprep.subr.mxu0 0.0
    %72 = vmatpush1.msra.mxu0 %v51
    %73 = vmatprep.subr.mxu0 0.0
    %74 = vmatpush1.msra.mxu0 %v50
    %75 = vmatprep.subr.mxu0 0.0
    %76 = vmatpush1.msra.mxu0 %v49
    %77 = vmatprep.subr.mxu0 0.0
    %78 = vmatpush1.msra.mxu0 %v48
    %79 = vmatprep.subr.mxu0 0.0
    %80 = vmatpush1.msra.mxu0 %v47
    %81 = vmatprep.subr.mxu0 0.0
    %82 = vmatpush1.msra.mxu0 %v46
    %83 = vmatprep.subr.mxu0 0.0
    %84 = vmatpush1.msra.mxu0 %v45
    %85 = vmatprep.subr.mxu0 0.0
    %86 = vmatpush1.msra.mxu0 %v44
    %87 = vmatprep.subr.mxu0 0.0
    %88 = vmatpush1.msra.mxu0 %v43
    %89 = vmatprep.subr.mxu0 0.0
    %90 = vmatpush1.msra.mxu0 %v42
    %91 = vmatprep.subr.mxu0 0.0
    %92 = vmatpush1.msra.mxu0 %v41
    %93 = vmatprep.subr.mxu0 0.0
    %94 = vmatpush1.msra.mxu0 %v40
    %95 = vmatprep.subr.mxu0 0.0
    %96 = vmatpush2.msra.mxu0 0.0
    %97 = vmatprep.subr.mxu0 0.0
    %98 = vmatpush2.msra.mxu0 0.0
    %99 = vmatprep.subr.mxu0 0.0
    %100 = vmatpush2.msra.mxu0 0.0
    %101 = vmatprep.subr.mxu0 0.0
    %102 = vmatpush2.msra.mxu0 0.0
    %103 = vmatprep.subr.mxu0 0.0
    %104 = vmatpush2.msra.mxu0 0.0
    %105 = vmatprep.subr.mxu0 0.0
    %106 = vmatpush2.msra.mxu0 0.0
    %107 = vmatprep.subr.mxu0 0.0
    %108 = vmatpush2.msra.mxu0 0.0
    %109 = vmatprep.subr.mxu0 0.0
    %110 = vmatpush2.msra.mxu0 0.0
    %111 = vmatprep.subr.mxu0 0.0
    %112 = vmatpush2.msra.mxu0 0.0
    %113 = vmatprep.subr.mxu0 0.0
    %114 = vmatpush2.msra.mxu0 0.0
    %115 = vmatprep.subr.mxu0 0.0
    %116 = vmatpush2.msra.mxu0 0.0
    %117 = vmatprep.subr.mxu0 0.0
    %118 = vmatpush2.msra.mxu0 0.0
    %119 = vmatprep.subr.mxu0 0.0
    %120 = vmatpush2.msra.mxu0 0.0
    %121 = vmatprep.subr.mxu0 0.0
    %122 = vmatpush2.msra.mxu0 0.0
    %123 = vmatprep.subr.mxu0 0.0
    %124 = vmatpush2.msra.mxu0 0.0
    %125 = vmatprep.subr.mxu0 0.0
    %126 = vmatpush2.msra.mxu0 0.0
    %127 = vmatprep.mubr.f32.mxu0 0.0
    %128 = vmatmul.mubr.f32.gmra.mxu0 %v39
    %v129 = vpop.f32.mrf.mxu0
    %v130 = vadd.f32 %v61, %v129
    %v131 = vpop.f32.mrf.mxu0
    %132 = vdwg.mxu0
    %v133 = vtanh.pop %v130
    %134 = vst [vmem:[#allocation2] sm:$0xff] %v133
    // Predicated region
    $region22: #{generator_forward.7} parent=1 // pred_check
      _
    $region23: #{generator_forward.7} parent=1 // pred_check_branch
      %136 = sbr.rel (0) target = $region25
    $region24: #{generator_forward.7} parent=1 // pred_region
      %s138 = ssub.s32 128, 128
      %139 = vsyncadd [#allocation3], %s138
      %s141 = sshll.u32 [#allocation2], 4
      %s142 = int_to_ptr.vmem [resolvable:$true] %s141
      %144 = dma.vmem_to_hbm [thread:$0]  %s142, 128, %s5, [#allocation3]
    $region25: #{generator_forward.7} parent=1 // pred_fallthru
      _
    // Predicated region
    $region26: #{generator_forward.7} parent=1 // pred_check
      _
    $region27: #{generator_forward.7} parent=1 // pred_check_branch
      %146 = sbr.rel (0) target = $region29
    $region28: #{generator_forward.7} parent=1 // pred_region
      %147 = dma.done [#allocation3], 128
    $region29: #{generator_forward.7} parent=1 // pred_fallthru
      _
    %148 = vsyncpa [#allocation3], 1

</llo_original>
